<compile_context>
chip_gen: v7x
topology: tpu7x:2x2x1
jax: 0.10.0
libtpu: 0.0.40
codegen_flags: <defaults>
</compile_context>

<pallas_src>
import functools

import jax
import jax.numpy as jnp
from jax import lax
from jax.experimental import pallas as pl
from jax.experimental.pallas import tpu as pltpu


def _round_up(n, m):
    return ((n + m - 1) // m) * m


def _ecapa_asp_kernel(x_ref, w1_ref, b1_ref, w2_ref, b2_ref, wemb_ref, bemb_ref,
                      out_ref, m_sc, s_sc, n1_sc, n2_sc, *, t_valid):
    """Grid = (batch blocks [parallel], T chunks [arbitrary] — online softmax)."""
    bB, bT, D = x_ref.shape
    j = pl.program_id(1)

    @pl.when(j == 0)
    def _init():
        m_sc[...] = jnp.full(m_sc.shape, -jnp.inf, jnp.float32)
        s_sc[...] = jnp.zeros(s_sc.shape, jnp.float32)
        n1_sc[...] = jnp.zeros(n1_sc.shape, jnp.float32)
        n2_sc[...] = jnp.zeros(n2_sc.shape, jnp.float32)

    # ---- attention MLP on the MXU: bf16 operands, f32 accumulation -----------------
    x_bf = x_ref[...]                                     # (bB, bT, D) bf16
    xf = x_bf.reshape(bB * bT, D)                         # bT multiple of 16 -> clean merge
    h = jnp.dot(xf, w1_ref[...], preferred_element_type=jnp.float32) + b1_ref[...]
    h = jnp.maximum(h, 0.0)                               # relu, f32
    logits = (jnp.dot(h.astype(jnp.bfloat16), w2_ref[...],
                      preferred_element_type=jnp.float32) + b2_ref[...])
    logits = logits.reshape(bB, bT, D)                    # att_with_context=True

    # ---- online softmax over T fused with attentive pooling -------------------------
    # attn = e / sum(e) is never formed; per T-chunk we update running m, sum(e),
    # sum(e*x), sum(e*x^2) in VMEM scratch (flash-attention style).
    x32 = x_bf.astype(jnp.float32)
    m_prev = m_sc[...]
    m_new = jnp.maximum(m_prev, jnp.max(logits, axis=1))  # (bB, D)
    alpha = jnp.exp(m_prev - m_new)
    e = jnp.exp(logits - m_new[:, None, :])
    if t_valid is not None:                               # static: mask padded time steps
        t_idx = j * bT + lax.broadcasted_iota(jnp.int32, (1, bT, 1), 1)
        e = jnp.where(t_idx < t_valid, e, 0.0)
    ex = e * x32
    s_sc[...] = alpha * s_sc[...] + jnp.sum(e, axis=1)
    n1_sc[...] = alpha * n1_sc[...] + jnp.sum(ex, axis=1)
    n2_sc[...] = alpha * n2_sc[...] + jnp.sum(ex * x32, axis=1)
    m_sc[...] = m_new

    # ---- finalize: mean / std + fused (BN-folded) embedding Linear ------------------
    @pl.when(j == pl.num_programs(1) - 1)
    def _finalize():
        r = pl.reciprocal(s_sc[...])                      # exact; (bB, D) is tiny
        mean = n1_sc[...] * r
        second = n2_sc[...] * r
        astd = jnp.sqrt(jnp.maximum(second - mean * mean, 1e-8))
        feat = jnp.concatenate([mean, astd], axis=-1).astype(jnp.bfloat16)
        out_ref[...] = (jnp.dot(feat, wemb_ref[...],
                                preferred_element_type=jnp.float32) + bemb_ref[...])


def _vmem_limit_bytes():
    try:
        cap = int(pltpu.get_tpu_info().vmem_capacity_bytes)
    except Exception:
        cap = 64 * 1024 * 1024                            # conservative (v7x-like) default
    # v5e/v6e (128 MiB physical) -> ~96 MiB; v7x (64 MiB) -> 48 MiB
    return min(cap * 3 // 4, 110 * 1024 * 1024)


def _choose_block_b(B, block_t, d_pad, att_pad, vmem_limit, requested):
    # Rough per-batch-row VMEM cost: double-buffered bf16 x block + ~6 live f32
    # (block_t, d_pad) temporaries + the hidden activation + scratch accumulators.
    per_row = block_t * (d_pad * (2 * 2 + 6 * 4) + att_pad * 4) + 4 * d_pad * 4
    max_rows = max(8, (vmem_limit // 2) // per_row)
    bb = int(min(requested, max_rows))
    if B <= bb:
        return B                                          # single block, no batch padding
    bb = max(8, (bb // 8) * 8)
    # keep >= 2 batch blocks so both v7x TensorCores get work on the parallel axis
    bb = min(bb, _round_up((B + 1) // 2, 8))
    return bb


def ecapa_asp_forward(x, params, emb_dim, block_b=32):
    """x: (B, C, H, W) NCHW (or already (B, D, T)); returns (B, emb_dim) float32."""
    if x.ndim == 4:
        x = x.reshape(x.shape[0], -1, x.shape[-1])        # (B, C*H, W) -- free reshape
    x = jnp.transpose(x, (0, 2, 1))                       # (B, T, D)
    B, T, D = x.shape

    d_pad, att_pad = params["w1_t"].shape
    emb_pad = params["b_emb"].shape[-1]
    if D > d_pad:
        raise ValueError("params were built for a smaller in_plane than the input")

    # T chunking (online softmax); 16-aligned for clean bf16 sublane packing.
    if T <= 256:
        block_t = _round_up(T, 16)
        t_pad = block_t
    else:
        block_t = 256
        t_pad = _round_up(T, block_t)

    vmem_limit = _vmem_limit_bytes()
    bb = _choose_block_b(B, block_t, d_pad, att_pad, vmem_limit, block_b)
    b_pad = _round_up(B, bb)

    # Single fused pass over x: transpose + bf16 cast + zero-pad (fused under jit).
    x = x.astype(jnp.bfloat16)
    if (b_pad, t_pad, d_pad) != (B, T, D):
        x = jnp.pad(x, ((0, b_pad - B), (0, t_pad - T), (0, d_pad - D)))

    grid = (b_pad // bb, t_pad // block_t)
    t_valid = None if t_pad == T else T

    # x is tiled over (batch, T-chunk); every weight BlockSpec returns a constant
    # block index so the weights stay VMEM-resident across grid steps.
    in_specs = [
        pl.BlockSpec((bb, block_t, d_pad), lambda i, j: (i, j, 0)),   # x (bf16)
        pl.BlockSpec((d_pad, att_pad), lambda i, j: (0, 0)),          # W1^T (bf16)
        pl.BlockSpec((1, att_pad), lambda i, j: (0, 0)),              # b1
        pl.BlockSpec((att_pad, d_pad), lambda i, j: (0, 0)),          # W2^T (bf16)
        pl.BlockSpec((1, d_pad), lambda i, j: (0, 0)),                # b2
        pl.BlockSpec((2 * d_pad, emb_pad), lambda i, j: (0, 0)),      # stacked BN-folded emb W (bf16)
        pl.BlockSpec((1, emb_pad), lambda i, j: (0, 0)),              # BN-folded emb bias
    ]
    out_specs = pl.BlockSpec((bb, emb_pad), lambda i, j: (i, 0))

    flops = 4 * b_pad * t_pad * d_pad * att_pad + 4 * b_pad * d_pad * emb_pad
    transcendentals = b_pad * t_pad * d_pad + 2 * b_pad * d_pad
    bytes_accessed = (b_pad * t_pad * d_pad * 2
                      + (d_pad * att_pad + att_pad * d_pad + 2 * d_pad * emb_pad) * 2
                      + (att_pad + d_pad + emb_pad) * 4
                      + b_pad * emb_pad * 4)

    out = pl.pallas_call(
        functools.partial(_ecapa_asp_kernel, t_valid=t_valid),
        out_shape=jax.ShapeDtypeStruct((b_pad, emb_pad), jnp.float32),
        grid=grid,
        in_specs=in_specs,
        out_specs=out_specs,
        scratch_shapes=[pltpu.VMEM((bb, d_pad), jnp.float32)] * 4,   # m, s, num1, num2
        compiler_params=pltpu.CompilerParams(
            dimension_semantics=("parallel", "arbitrary"),
            vmem_limit_bytes=int(vmem_limit)),
        cost_estimate=pl.CostEstimate(
            flops=int(flops),
            transcendentals=int(transcendentals),
            bytes_accessed=int(bytes_accessed)),
    )(x, params["w1_t"], params["b1"], params["w2_t"], params["b2"],
      params["w_emb"], params["b_emb"])

    return out[:B, :emb_dim]


def make_params(key, in_plane, att_dim=128, emb_dim=192):
    """Deterministic synthetic parameters matching the torch module's shapes.

    Weights are transposed for x @ W.T, zero-padded so every contraction / lane dim is
    a multiple of 128, cast to bf16 for the MXU, and the eval-mode BatchNorm1d(2*in_plane)
    is constant-folded into a single stacked embedding weight/bias.
    """
    ks = jax.random.split(key, 6)
    # torch nn.Linear stores weight as (out, in); transpose for x @ W.T matmuls.
    w1 = 0.05 * jax.random.normal(ks[0], (att_dim, in_plane), jnp.float32)
    b1 = 0.05 * jax.random.normal(ks[1], (att_dim,), jnp.float32)
    w2 = 0.05 * jax.random.normal(ks[2], (in_plane, att_dim), jnp.float32)   # att_with_context
    b2 = 0.05 * jax.random.normal(ks[3], (in_plane,), jnp.float32)
    w_emb = 0.05 * jax.random.normal(ks[4], (emb_dim, 2 * in_plane), jnp.float32)
    b_emb = 0.05 * jax.random.normal(ks[5], (emb_dim,), jnp.float32)

    # BatchNorm1d(2*in_plane) eval-mode fold: scale = gamma/sqrt(var+eps),
    # shift = beta - running_mean*scale.
    gamma = jnp.ones((2 * in_plane,), jnp.float32)
    beta = jnp.zeros((2 * in_plane,), jnp.float32)
    running_mean = jnp.zeros((2 * in_plane,), jnp.float32)
    running_var = jnp.ones((2 * in_plane,), jnp.float32)
    eps = 1e-5
    scale = gamma / jnp.sqrt(running_var + eps)
    shift = beta - running_mean * scale

    d_pad = _round_up(in_plane, 128)      # full lane width for every (.., D) vreg
    att_pad = _round_up(att_dim, 128)
    emb_pad = _round_up(emb_dim, 128)     # lane-dense (unmasked) output stores

    w1_t = jnp.zeros((d_pad, att_pad), jnp.float32).at[:in_plane, :att_dim].set(w1.T)
    b1_p = jnp.zeros((1, att_pad), jnp.float32).at[0, :att_dim].set(b1)
    w2_t = jnp.zeros((att_pad, d_pad), jnp.float32).at[:att_dim, :in_plane].set(w2.T)
    b2_p = jnp.zeros((1, d_pad), jnp.float32).at[0, :in_plane].set(b2)

    # Fold BN into the embedding layer and stack the mean/std halves so the kernel
    # does one (bB, 2*d_pad) @ (2*d_pad, emb_pad) matmul: (z*scale+shift) @ W ==
    # z @ (scale[:,None]*W) + shift @ W.
    w_emb_t = w_emb.T                                     # (2*in_plane, emb_dim)
    w_m = scale[:in_plane, None] * w_emb_t[:in_plane]
    w_s = scale[in_plane:, None] * w_emb_t[in_plane:]
    b_f = (b_emb + shift[:in_plane] @ w_emb_t[:in_plane]
           + shift[in_plane:] @ w_emb_t[in_plane:])
    w_stack = jnp.zeros((2 * d_pad, emb_pad), jnp.float32)
    w_stack = w_stack.at[:in_plane, :emb_dim].set(w_m)
    w_stack = w_stack.at[d_pad:d_pad + in_plane, :emb_dim].set(w_s)
    b_f_p = jnp.zeros((1, emb_pad), jnp.float32).at[0, :emb_dim].set(b_f)

    return dict(
        w1_t=w1_t.astype(jnp.bfloat16),      # (d_pad, att_pad)   bf16 MXU operand
        b1=b1_p,                             # (1, att_pad)       f32
        w2_t=w2_t.astype(jnp.bfloat16),      # (att_pad, d_pad)   bf16 MXU operand
        b2=b2_p,                             # (1, d_pad)         f32
        w_emb=w_stack.astype(jnp.bfloat16),  # (2*d_pad, emb_pad) bf16, BN-folded, stacked
        b_emb=b_f_p,                         # (1, emb_pad)       f32, BN-folded
    )


if __name__ == "__main__":
    key = jax.random.PRNGKey(0)
    k_x, k_p = jax.random.split(key)

    B, C, H, W = 2, 4, 16, 16          # NCHW input -> in_plane = C*H = 64, T = W = 16
    in_plane = C * H
    att_dim, emb_dim = 128, 192

    x = jax.random.normal(k_x, (B, C, H, W), dtype=jnp.float32)
    params = make_params(k_p, in_plane, att_dim=att_dim, emb_dim=emb_dim)

    fwd = jax.jit(functools.partial(ecapa_asp_forward, emb_dim=emb_dim))
    out = fwd(x, params)
    out = jax.block_until_ready(out)
    assert out.shape == (B, emb_dim)
    assert bool(jnp.all(jnp.isfinite(out)))
    print("KERNEL_OK")
</pallas_src>

<mosaic_0001>
module attributes {stable_mosaic.version = 11 : i64} {
  func.func @_ecapa_asp_kernel(%arg0: i32, %arg1: i32, %arg2: memref<2x16x128xbf16, #tpu.memory_space<vmem>>, %arg3: memref<128x128xbf16, #tpu.memory_space<vmem>>, %arg4: memref<1x128xf32, #tpu.memory_space<vmem>>, %arg5: memref<128x128xbf16, #tpu.memory_space<vmem>>, %arg6: memref<1x128xf32, #tpu.memory_space<vmem>>, %arg7: memref<256x256xbf16, #tpu.memory_space<vmem>>, %arg8: memref<1x256xf32, #tpu.memory_space<vmem>>, %arg9: memref<2x256xf32, #tpu.memory_space<vmem>>, %arg10: memref<2x128xf32, #tpu.memory_space<vmem>>, %arg11: memref<2x128xf32, #tpu.memory_space<vmem>>, %arg12: memref<2x128xf32, #tpu.memory_space<vmem>>, %arg13: memref<2x128xf32, #tpu.memory_space<vmem>>) attributes {dimension_semantics = [#tpu.dimension_semantics<parallel>, #tpu.dimension_semantics<arbitrary>], iteration_bounds = array<i64: 1, 1>, scalar_prefetch = 0 : i64, scratch_operands = 4 : i64, tpu.core_type = #tpu.core_type<tc>, window_params = [{transform_indices = @transform_0, window_bounds = array<i64: 2, 16, 128>}, {pipeline_mode = #tpu.pipeline_mode<synchronous>, transform_indices = @transform_1, window_bounds = array<i64: 128, 128>}, {pipeline_mode = #tpu.pipeline_mode<synchronous>, transform_indices = @transform_2, window_bounds = array<i64: 1, 128>}, {pipeline_mode = #tpu.pipeline_mode<synchronous>, transform_indices = @transform_3, window_bounds = array<i64: 128, 128>}, {pipeline_mode = #tpu.pipeline_mode<synchronous>, transform_indices = @transform_4, window_bounds = array<i64: 1, 128>}, {pipeline_mode = #tpu.pipeline_mode<synchronous>, transform_indices = @transform_5, window_bounds = array<i64: 256, 256>}, {pipeline_mode = #tpu.pipeline_mode<synchronous>, transform_indices = @transform_6, window_bounds = array<i64: 1, 256>}, {transform_indices = @transform_7, window_bounds = array<i64: 2, 256>}]} {
    %c0_i32 = arith.constant 0 : i32
    %0 = arith.cmpi eq, %arg1, %c0_i32 : i32
    %1 = arith.extui %0 : i1 to i32
    %c0_i32_0 = arith.constant 0 : i32
    %2 = arith.cmpi ne, %1, %c0_i32_0 : i32
    scf.if %2 {
      %cst_35 = arith.constant 0xFF800000 : f32
      %50 = vector.broadcast %cst_35 : f32 to vector<2x128xf32>
      %c0_36 = arith.constant 0 : index
      %c0_37 = arith.constant 0 : index
      %51 = vector.load %arg10[%c0_36, %c0_37] : memref<2x128xf32, #tpu.memory_space<vmem>>, vector<2x128xf32>
      tpu.vector_store %arg10[%c0_36, %c0_37], %50 {strides = array<i32>} : memref<2x128xf32, #tpu.memory_space<vmem>>, vector<2x128xf32>,
      %cst_38 = arith.constant 0.000000e+00 : f32
      %52 = vector.broadcast %cst_38 : f32 to vector<2x128xf32>
      %c0_39 = arith.constant 0 : index
      %c0_40 = arith.constant 0 : index
      %53 = vector.load %arg11[%c0_39, %c0_40] : memref<2x128xf32, #tpu.memory_space<vmem>>, vector<2x128xf32>
      tpu.vector_store %arg11[%c0_39, %c0_40], %52 {strides = array<i32>} : memref<2x128xf32, #tpu.memory_space<vmem>>, vector<2x128xf32>,
      %cst_41 = arith.constant 0.000000e+00 : f32
      %54 = vector.broadcast %cst_41 : f32 to vector<2x128xf32>
      %c0_42 = arith.constant 0 : index
      %c0_43 = arith.constant 0 : index
      %55 = vector.load %arg12[%c0_42, %c0_43] : memref<2x128xf32, #tpu.memory_space<vmem>>, vector<2x128xf32>
      tpu.vector_store %arg12[%c0_42, %c0_43], %54 {strides = array<i32>} : memref<2x128xf32, #tpu.memory_space<vmem>>, vector<2x128xf32>,
      %cst_44 = arith.constant 0.000000e+00 : f32
      %56 = vector.broadcast %cst_44 : f32 to vector<2x128xf32>
      %c0_45 = arith.constant 0 : index
      %c0_46 = arith.constant 0 : index
      %57 = vector.load %arg13[%c0_45, %c0_46] : memref<2x128xf32, #tpu.memory_space<vmem>>, vector<2x128xf32>
      tpu.vector_store %arg13[%c0_45, %c0_46], %56 {strides = array<i32>} : memref<2x128xf32, #tpu.memory_space<vmem>>, vector<2x128xf32>,
    } else {
    }
    %c0 = arith.constant 0 : index
    %c0_1 = arith.constant 0 : index
    %c0_2 = arith.constant 0 : index
    %3 = vector.load %arg2[%c0, %c0_1, %c0_2] : memref<2x16x128xbf16, #tpu.memory_space<vmem>>, vector<2x16x128xbf16>
    %4 = vector.shape_cast %3 : vector<2x16x128xbf16> to vector<32x128xbf16>
    %c0_3 = arith.constant 0 : index
    %c0_4 = arith.constant 0 : index
    %5 = vector.load %arg3[%c0_3, %c0_4] : memref<128x128xbf16, #tpu.memory_space<vmem>>, vector<128x128xbf16>
    %cst = arith.constant dense<0.000000e+00> : vector<32x128xf32>
    %6 = tpu.matmul %4, %5, %cst {dimension_numbers = #tpu.dot_dimension_numbers<[1], [0], [0], [1], [0, 0, 1, 1], [], []>} : vector<32x128xbf16>, vector<128x128xbf16>, vector<32x128xf32> -> vector<32x128xf32>
    %c0_5 = arith.constant 0 : index
    %c0_6 = arith.constant 0 : index
    %7 = vector.load %arg4[%c0_5, %c0_6] : memref<1x128xf32, #tpu.memory_space<vmem>>, vector<1x128xf32>
    %8 = vector.broadcast %7 : vector<1x128xf32> to vector<32x128xf32>
    %9 = arith.addf %6, %8 : vector<32x128xf32>
    %cst_7 = arith.constant 0.000000e+00 : f32
    %10 = vector.broadcast %cst_7 : f32 to vector<32x128xf32>
    %11 = arith.maximumf %9, %10 : vector<32x128xf32>
    %12 = arith.truncf %11 : vector<32x128xf32> to vector<32x128xbf16>
    %c0_8 = arith.constant 0 : index
    %c0_9 = arith.constant 0 : index
    %13 = vector.load %arg5[%c0_8, %c0_9] : memref<128x128xbf16, #tpu.memory_space<vmem>>, vector<128x128xbf16>
    %cst_10 = arith.constant dense<0.000000e+00> : vector<32x128xf32>
    %14 = tpu.matmul %12, %13, %cst_10 {dimension_numbers = #tpu.dot_dimension_numbers<[1], [0], [0], [1], [0, 0, 1, 1], [], []>} : vector<32x128xbf16>, vector<128x128xbf16>, vector<32x128xf32> -> vector<32x128xf32>
    %c0_11 = arith.constant 0 : index
    %c0_12 = arith.constant 0 : index
    %15 = vector.load %arg6[%c0_11, %c0_12] : memref<1x128xf32, #tpu.memory_space<vmem>>, vector<1x128xf32>
    %16 = vector.broadcast %15 : vector<1x128xf32> to vector<32x128xf32>
    %17 = arith.addf %14, %16 : vector<32x128xf32>
    %18 = vector.shape_cast %17 : vector<32x128xf32> to vector<2x16x128xf32>
    %19 = arith.extf %3 : vector<2x16x128xbf16> to vector<2x16x128xf32>
    %c0_13 = arith.constant 0 : index
    %c0_14 = arith.constant 0 : index
    %20 = vector.load %arg10[%c0_13, %c0_14] : memref<2x128xf32, #tpu.memory_space<vmem>>, vector<2x128xf32>
    %cst_15 = arith.constant dense<0xFF800000> : vector<2x128xf32>
    %21 = vector.multi_reduction <maximumf>, %18, %cst_15 [1] : vector<2x16x128xf32> to vector<2x128xf32>
    %22 = arith.maximumf %20, %21 : vector<2x128xf32>
    %23 = arith.subf %20, %22 : vector<2x128xf32>
    %24 = math.exp %23 : vector<2x128xf32>
    %25 = vector.shape_cast %22 : vector<2x128xf32> to vector<2x1x128xf32>
    %26 = vector.broadcast %25 : vector<2x1x128xf32> to vector<2x16x128xf32>
    %27 = arith.subf %18, %26 : vector<2x16x128xf32>
    %28 = math.exp %27 : vector<2x16x128xf32>
    %29 = arith.mulf %28, %19 : vector<2x16x128xf32>
    %c0_16 = arith.constant 0 : index
    %c0_17 = arith.constant 0 : index
    %30 = vector.load %arg11[%c0_16, %c0_17] : memref<2x128xf32, #tpu.memory_space<vmem>>, vector<2x128xf32>
    %31 = arith.mulf %24, %30 : vector<2x128xf32>
    %cst_18 = arith.constant dense<0.000000e+00> : vector<2x128xf32>
    %32 = vector.multi_reduction <add>, %28, %cst_18 [1] : vector<2x16x128xf32> to vector<2x128xf32>
    %33 = arith.addf %31, %32 : vector<2x128xf32>
    %c0_19 = arith.constant 0 : index
    %c0_20 = arith.constant 0 : index
    %34 = vector.load %arg11[%c0_19, %c0_20] : memref<2x128xf32, #tpu.memory_space<vmem>>, vector<2x128xf32>
    tpu.vector_store %arg11[%c0_19, %c0_20], %33 {strides = array<i32>} : memref<2x128xf32, #tpu.memory_space<vmem>>, vector<2x128xf32>,
    %c0_21 = arith.constant 0 : index
    %c0_22 = arith.constant 0 : index
    %35 = vector.load %arg12[%c0_21, %c0_22] : memref<2x128xf32, #tpu.memory_space<vmem>>, vector<2x128xf32>
    %36 = arith.mulf %24, %35 : vector<2x128xf32>
    %cst_23 = arith.constant dense<0.000000e+00> : vector<2x128xf32>
    %37 = vector.multi_reduction <add>, %29, %cst_23 [1] : vector<2x16x128xf32> to vector<2x128xf32>
    %38 = arith.addf %36, %37 : vector<2x128xf32>
    %c0_24 = arith.constant 0 : index
    %c0_25 = arith.constant 0 : index
    %39 = vector.load %arg12[%c0_24, %c0_25] : memref<2x128xf32, #tpu.memory_space<vmem>>, vector<2x128xf32>
    tpu.vector_store %arg12[%c0_24, %c0_25], %38 {strides = array<i32>} : memref<2x128xf32, #tpu.memory_space<vmem>>, vector<2x128xf32>,
    %c0_26 = arith.constant 0 : index
    %c0_27 = arith.constant 0 : index
    %40 = vector.load %arg13[%c0_26, %c0_27] : memref<2x128xf32, #tpu.memory_space<vmem>>, vector<2x128xf32>
    %41 = arith.mulf %24, %40 : vector<2x128xf32>
    %42 = arith.mulf %29, %19 : vector<2x16x128xf32>
    %cst_28 = arith.constant dense<0.000000e+00> : vector<2x128xf32>
    %43 = vector.multi_reduction <add>, %42, %cst_28 [1] : vector<2x16x128xf32> to vector<2x128xf32>
    %44 = arith.addf %41, %43 : vector<2x128xf32>
    %c0_29 = arith.constant 0 : index
    %c0_30 = arith.constant 0 : index
    %45 = vector.load %arg13[%c0_29, %c0_30] : memref<2x128xf32, #tpu.memory_space<vmem>>, vector<2x128xf32>
    tpu.vector_store %arg13[%c0_29, %c0_30], %44 {strides = array<i32>} : memref<2x128xf32, #tpu.memory_space<vmem>>, vector<2x128xf32>,
    %c0_31 = arith.constant 0 : index
    %c0_32 = arith.constant 0 : index
    %46 = vector.load %arg10[%c0_31, %c0_32] : memref<2x128xf32, #tpu.memory_space<vmem>>, vector<2x128xf32>
    tpu.vector_store %arg10[%c0_31, %c0_32], %22 {strides = array<i32>} : memref<2x128xf32, #tpu.memory_space<vmem>>, vector<2x128xf32>,
    %c0_i32_33 = arith.constant 0 : i32
    %47 = arith.cmpi eq, %arg1, %c0_i32_33 : i32
    %48 = arith.extui %47 : i1 to i32
    %c0_i32_34 = arith.constant 0 : i32
    %49 = arith.cmpi ne, %48, %c0_i32_34 : i32
    scf.if %49 {
      %c0_35 = arith.constant 0 : index
      %c0_36 = arith.constant 0 : index
      %50 = vector.load %arg11[%c0_35, %c0_36] : memref<2x128xf32, #tpu.memory_space<vmem>>, vector<2x128xf32>
      %51 = tpu.reciprocal %50 : vector<2x128xf32> -> vector<2x128xf32>
      %c0_37 = arith.constant 0 : index
      %c0_38 = arith.constant 0 : index
      %52 = vector.load %arg12[%c0_37, %c0_38] : memref<2x128xf32, #tpu.memory_space<vmem>>, vector<2x128xf32>
      %53 = arith.mulf %52, %51 : vector<2x128xf32>
      %c0_39 = arith.constant 0 : index
      %c0_40 = arith.constant 0 : index
      %54 = vector.load %arg13[%c0_39, %c0_40] : memref<2x128xf32, #tpu.memory_space<vmem>>, vector<2x128xf32>
      %55 = arith.mulf %54, %51 : vector<2x128xf32>
      %56 = arith.mulf %53, %53 : vector<2x128xf32>
      %57 = arith.subf %55, %56 : vector<2x128xf32>
      %cst_41 = arith.constant 9.99999993E-9 : f32
      %58 = vector.broadcast %cst_41 : f32 to vector<2x128xf32>
      %59 = arith.maximumf %57, %58 : vector<2x128xf32>
      %60 = math.sqrt %59 : vector<2x128xf32>
      %61 = tpu.concatenate %53, %60 in 1 : vector<2x128xf32>, vector<2x128xf32> -> vector<2x256xf32>
      %62 = arith.truncf %61 : vector<2x256xf32> to vector<2x256xbf16>
      %c0_42 = arith.constant 0 : index
      %c0_43 = arith.constant 0 : index
      %63 = vector.load %arg7[%c0_42, %c0_43] : memref<256x256xbf16, #tpu.memory_space<vmem>>, vector<256x256xbf16>
      %cst_44 = arith.constant dense<0.000000e+00> : vector<2x256xf32>
      %64 = tpu.matmul %62, %63, %cst_44 {dimension_numbers = #tpu.dot_dimension_numbers<[1], [0], [0], [1], [0, 0, 1, 1], [], []>} : vector<2x256xbf16>, vector<256x256xbf16>, vector<2x256xf32> -> vector<2x256xf32>
      %c0_45 = arith.constant 0 : index
      %c0_46 = arith.constant 0 : index
      %65 = vector.load %arg8[%c0_45, %c0_46] : memref<1x256xf32, #tpu.memory_space<vmem>>, vector<1x256xf32>
      %66 = vector.broadcast %65 : vector<1x256xf32> to vector<2x256xf32>
      %67 = arith.addf %64, %66 : vector<2x256xf32>
      %c0_47 = arith.constant 0 : index
      %c0_48 = arith.constant 0 : index
      %68 = vector.load %arg9[%c0_47, %c0_48] : memref<2x256xf32, #tpu.memory_space<vmem>>, vector<2x256xf32>
      tpu.vector_store %arg9[%c0_47, %c0_48], %67 {strides = array<i32>} : memref<2x256xf32, #tpu.memory_space<vmem>>, vector<2x256xf32>,
    } else {
    }
    return
  }
  func.func @transform_0(%arg0: i32, %arg1: i32) -> (i32, i32, i32) {
    %c0_i32 = arith.constant 0 : i32
    %c0_i32_0 = arith.constant 0 : i32
    return %arg0, %arg1, %c0_i32 : i32, i32, i32
  }
  func.func @transform_1(%arg0: i32, %arg1: i32) -> (i32, i32) {
    %c0_i32 = arith.constant 0 : i32
    %c0_i32_0 = arith.constant 0 : i32
    %c0_i32_1 = arith.constant 0 : i32
    return %c0_i32, %c0_i32_0 : i32, i32
  }
  func.func @transform_2(%arg0: i32, %arg1: i32) -> (i32, i32) {
    %c0_i32 = arith.constant 0 : i32
    %c0_i32_0 = arith.constant 0 : i32
    %c0_i32_1 = arith.constant 0 : i32
    return %c0_i32, %c0_i32_0 : i32, i32
  }
  func.func @transform_3(%arg0: i32, %arg1: i32) -> (i32, i32) {
    %c0_i32 = arith.constant 0 : i32
    %c0_i32_0 = arith.constant 0 : i32
    %c0_i32_1 = arith.constant 0 : i32
    return %c0_i32, %c0_i32_0 : i32, i32
  }
  func.func @transform_4(%arg0: i32, %arg1: i32) -> (i32, i32) {
    %c0_i32 = arith.constant 0 : i32
    %c0_i32_0 = arith.constant 0 : i32
    %c0_i32_1 = arith.constant 0 : i32
    return %c0_i32, %c0_i32_0 : i32, i32
  }
  func.func @transform_5(%arg0: i32, %arg1: i32) -> (i32, i32) {
    %c0_i32 = arith.constant 0 : i32
    %c0_i32_0 = arith.constant 0 : i32
    %c0_i32_1 = arith.constant 0 : i32
    return %c0_i32, %c0_i32_0 : i32, i32
  }
  func.func @transform_6(%arg0: i32, %arg1: i32) -> (i32, i32) {
    %c0_i32 = arith.constant 0 : i32
    %c0_i32_0 = arith.constant 0 : i32
    %c0_i32_1 = arith.constant 0 : i32
    return %c0_i32, %c0_i32_0 : i32, i32
  }
  func.func @transform_7(%arg0: i32, %arg1: i32) -> (i32, i32) {
    %c0_i32 = arith.constant 0 : i32
    %c0_i32_0 = arith.constant 0 : i32
    return %arg0, %c0_i32 : i32, i32
  }
}

</mosaic_0001>

<llo_original>
// kernel: ecapa_asp_forward.1
$region0: #{ecapa_asp_forward.1}
  #allocation0 [shape = 'u32[]', space=smem, size = 0x4, offset = 0x4, fixed_abs, tag = 'smem constant byte address 0x4 - core index']
  #allocation1 [shape = 'u32[144,128]{1,0:T(1,128)}', space=vmem, size = 0x12000, scoped, tag = 'internal scratch']
  #allocation2 [shape = 'f32[2,128]{1,0:T(2,128)}', space=vmem, size = 0x400, scoped, tag = 'scratch operand']
  #allocation3 [shape = 'f32[2,128]{1,0:T(2,128)}', space=vmem, size = 0x400, scoped, tag = 'scratch operand']
  #allocation4 [shape = 'f32[2,128]{1,0:T(2,128)}', space=vmem, size = 0x400, scoped, tag = 'scratch operand']
  #allocation5 [shape = 'f32[2,128]{1,0:T(2,128)}', space=vmem, size = 0x400, scoped, tag = 'scratch operand']
  %s0 = inlined_call_operand.vmem [shape: bf16[2,16,128], index: 0, kind: input, shape index: {}]
  %s1 = inlined_call_operand.vmem [shape: bf16[128,128], index: 1, kind: input, shape index: {}]
  %s2 = inlined_call_operand.vmem [shape: f32[1,128], index: 2, kind: input, shape index: {}]
  %s3 = inlined_call_operand.hbm [shape: bf16[128,128], index: 3, kind: input, shape index: {}]
  %s4 = inlined_call_operand.vmem [shape: f32[1,128], index: 4, kind: input, shape index: {}]
  %s5 = inlined_call_operand.vmem [shape: bf16[256,256], index: 5, kind: input, shape index: {}]
  %s6 = inlined_call_operand.vmem [shape: f32[1,256], index: 6, kind: input, shape index: {}]
  %s7 = inlined_call_operand.hbm [shape: f32[2,256], index: 7, kind: output, shape index: {}]
  %s8 = sld [smem:[#allocation0]]
  $region50: #{ecapa_asp_forward.1} parent=0
    _
  %s10 = ssub.s32 1, %s8
  %s11 = scalar_select 0, %s10, %s8
  $region1: #{ecapa_asp_forward.1} parent=0
    #allocation6 [shape = 'u8[32768]{0}', space=vmem, size = 0x8000, scoped, tag = 'input window, operand 3, single buffered']
    #allocation7 [shape = 's32[1]{0}', space=sflag, size = 0x4, scoped, tag = 'scoped memory for ecapa_asp_forward.1']
    #allocation8 [shape = 's32[1]{0}', space=sflag, size = 0x4, scoped, tag = 'scoped memory for ecapa_asp_forward.1']
    #allocation9 [shape = 'u8[2048]{0}', space=vmem, size = 0x800, scoped, tag = 'output window, operand 0, single buffered']
    %12 = vsyncpa [#allocation7], 0
    %13 = vsyncpa [#allocation8], 0
    // Predicated region
    $region2: #{ecapa_asp_forward.1} parent=1 // pred_check
      _
    $region3: #{ecapa_asp_forward.1} parent=1 // pred_check_branch
      %15 = sbr.rel (0) target = $region5
    $region4: #{ecapa_asp_forward.1} parent=1 // pred_region
      _
    $region5: #{ecapa_asp_forward.1} parent=1 // pred_fallthru
      _
    // Predicated region
    $region6: #{ecapa_asp_forward.1} parent=1 // pred_check
      _
    $region7: #{ecapa_asp_forward.1} parent=1 // pred_check_branch
      %17 = sbr.rel (0) target = $region9
    $region8: #{ecapa_asp_forward.1} parent=1 // pred_region
      _
    $region9: #{ecapa_asp_forward.1} parent=1 // pred_fallthru
      _
    // Predicated region
    $region10: #{ecapa_asp_forward.1} parent=1 // pred_check
      _
    $region11: #{ecapa_asp_forward.1} parent=1 // pred_check_branch
      %19 = sbr.rel (0) target = $region13
    $region12: #{ecapa_asp_forward.1} parent=1 // pred_region
      _
    $region13: #{ecapa_asp_forward.1} parent=1 // pred_fallthru
      _
    // Predicated region
    $region14: #{ecapa_asp_forward.1} parent=1 // pred_check
      _
    $region15: #{ecapa_asp_forward.1} parent=1 // pred_check_branch
      %21 = sbr.rel (0) target = $region17
    $region16: #{ecapa_asp_forward.1} parent=1 // pred_region
      %s23 = ssub.s32 1024, 1024
      %24 = vsyncadd [#allocation7], %s23
      %s25 = sshll.u32 [#allocation6], 4
      %s26 = int_to_ptr.vmem [resolvable:$true] %s25
      %31 = dma.hbm_to_vmem [thread:$0]  %s3, 1024, %s26, [#allocation7], 64, 64, 4
    $region17: #{ecapa_asp_forward.1} parent=1 // pred_fallthru
      _
    // Predicated region
    $region18: #{ecapa_asp_forward.1} parent=1 // pred_check
      _
    $region19: #{ecapa_asp_forward.1} parent=1 // pred_check_branch
      %33 = sbr.rel (0) target = $region21
    $region20: #{ecapa_asp_forward.1} parent=1 // pred_region
      _
    $region21: #{ecapa_asp_forward.1} parent=1 // pred_fallthru
      _
    // Predicated region
    $region22: #{ecapa_asp_forward.1} parent=1 // pred_check
      _
    $region23: #{ecapa_asp_forward.1} parent=1 // pred_check_branch
      %35 = sbr.rel (0) target = $region25
    $region24: #{ecapa_asp_forward.1} parent=1 // pred_region
      _
    $region25: #{ecapa_asp_forward.1} parent=1 // pred_fallthru
      _
    // Predicated region
    $region26: #{ecapa_asp_forward.1} parent=1 // pred_check
      _
    $region27: #{ecapa_asp_forward.1} parent=1 // pred_check_branch
      %37 = sbr.rel (0) target = $region29
    $region28: #{ecapa_asp_forward.1} parent=1 // pred_region
      _
    $region29: #{ecapa_asp_forward.1} parent=1 // pred_fallthru
      _
    // Predicated region
    $region30: #{ecapa_asp_forward.1} parent=1 // pred_check
      _
    $region31: #{ecapa_asp_forward.1} parent=1 // pred_check_branch
      %39 = sbr.rel (0) target = $region33
    $region32: #{ecapa_asp_forward.1} parent=1 // pred_region
      %40 = dma.done [#allocation7], 1024
    $region33: #{ecapa_asp_forward.1} parent=1 // pred_fallthru
      _
    %p42 = scmp.eq.s32.totalorder 0, 0
    // Predicated region
    $region34: #{ecapa_asp_forward.1} parent=1 // pred_check
      %p43 = pneg %p42
    $region35: #{ecapa_asp_forward.1} parent=1 // pred_check_branch
      %45 = sbr.rel (%p43) target = $region37
    $region36: #{ecapa_asp_forward.1} parent=1 // pred_region
      %46 = vst [vmem:[#allocation2] sm:$0x3] -inf
      %47 = vst [vmem:[#allocation3] sm:$0x3] 0.0
      %48 = vst [vmem:[#allocation4] sm:$0x3] 0.0
      %49 = vst [vmem:[#allocation5] sm:$0x3] 0.0
    $region37: #{ecapa_asp_forward.1} parent=1 // pred_fallthru
      _
    %v50 = vld [vmem:[%s0] sm:$0xf]
    %v51 = vld [vmem:[%s0 + $0x4] sm:$0xf]
    %v52 = vld [vmem:[%s0 + $0x8] sm:$0xf]
    %v53 = vld [vmem:[%s0 + $0xc] sm:$0xf]
    %v54 = vld [vmem:[%s1] sm:$0xf]
    %v55 = vld [vmem:[%s1 + $0x4] sm:$0xf]
    %v56 = vld [vmem:[%s1 + $0x8] sm:$0xf]
    %v57 = vld [vmem:[%s1 + $0xc] sm:$0xf]
    %v58 = vld [vmem:[%s1 + $0x10] sm:$0xf]
    %v59 = vld [vmem:[%s1 + $0x14] sm:$0xf]
    %v60 = vld [vmem:[%s1 + $0x18] sm:$0xf]
    %v61 = vld [vmem:[%s1 + $0x1c] sm:$0xf]
    %v62 = vld [vmem:[%s1 + $0x20] sm:$0xf]
    %v63 = vld [vmem:[%s1 + $0x24] sm:$0xf]
    %v64 = vld [vmem:[%s1 + $0x28] sm:$0xf]
    %v65 = vld [vmem:[%s1 + $0x2c] sm:$0xf]
    %v66 = vld [vmem:[%s1 + $0x30] sm:$0xf]
    %v67 = vld [vmem:[%s1 + $0x34] sm:$0xf]
    %v68 = vld [vmem:[%s1 + $0x38] sm:$0xf]
    %v69 = vld [vmem:[%s1 + $0x3c] sm:$0xf]
    %v70 = vld [vmem:[%s2] sm:$0x1]
    %v72 = vlaneseq
    %v73 = vshrl.u32 %v72, 7
    %v74 = vsub.s32 0, %v73
    %v75 = vrot.slane %v70, %v74
    %v81 = vunpack.c.l.b16 %v50
    %v82 = vunpack.c.l.b16 %v51
    %v83 = vunpack.c.l.b16 %v52
    %v84 = vunpack.c.l.b16 %v53
    %v85 = vpack.c.b16 %v82, %v81
    %v86 = vpack.c.b16 %v84, %v83
    %v105 = vunpack.c.l.b16 %v54
    %v106 = vunpack.c.l.b16 %v55
    %v107 = vunpack.c.l.b16 %v56
    %v108 = vunpack.c.l.b16 %v57
    %v109 = vunpack.c.l.b16 %v58
    %v110 = vunpack.c.l.b16 %v59
    %v111 = vunpack.c.l.b16 %v60
    %v112 = vunpack.c.l.b16 %v61
    %v113 = vunpack.c.l.b16 %v62
    %v114 = vunpack.c.l.b16 %v63
    %v115 = vunpack.c.l.b16 %v64
    %v116 = vunpack.c.l.b16 %v65
    %v117 = vunpack.c.l.b16 %v66
    %v118 = vunpack.c.l.b16 %v67
    %v119 = vunpack.c.l.b16 %v68
    %v120 = vunpack.c.l.b16 %v69
    %v121 = vpack.c.b16 %v106, %v105
    %v122 = vpack.c.b16 %v108, %v107
    %v123 = vpack.c.b16 %v110, %v109
    %v124 = vpack.c.b16 %v112, %v111
    %v125 = vpack.c.b16 %v114, %v113
    %v126 = vpack.c.b16 %v116, %v115
    %v127 = vpack.c.b16 %v118, %v117
    %v128 = vpack.c.b16 %v120, %v119
    %137 = vmatprep.subr.bf16.mxu0 0
    %138 = vmatpush1.bf16.msra.mxu0 %v121
    %139 = vmatprep.subr.bf16.mxu0 0
    %140 = vmatpush1.bf16.msra.mxu0 %v122
    %141 = vmatprep.subr.bf16.mxu0 0
    %142 = vmatpush1.bf16.msra.mxu0 %v123
    %143 = vmatprep.subr.bf16.mxu0 0
    %144 = vmatpush1.bf16.msra.mxu0 %v124
    %145 = vmatprep.subr.bf16.mxu0 0
    %146 = vmatpush1.bf16.msra.mxu0 %v125
    %147 = vmatprep.subr.bf16.mxu0 0
    %148 = vmatpush1.bf16.msra.mxu0 %v126
    %149 = vmatprep.subr.bf16.mxu0 0
    %150 = vmatpush1.bf16.msra.mxu0 %v127
    %151 = vmatprep.subr.bf16.mxu0 0
    %152 = vmatpush1.bf16.msra.mxu0 %v128
    %153 = vmatprep.subr.bf16.mxu0 0
    %154 = vmatpush1.bf16.msra.mxu0 0
    %155 = vmatprep.subr.bf16.mxu0 0
    %156 = vmatpush1.bf16.msra.mxu0 0
    %157 = vmatprep.subr.bf16.mxu0 0
    %158 = vmatpush1.bf16.msra.mxu0 0
    %159 = vmatprep.subr.bf16.mxu0 0
    %160 = vmatpush1.bf16.msra.mxu0 0
    %161 = vmatprep.subr.bf16.mxu0 0
    %162 = vmatpush1.bf16.msra.mxu0 0
    %163 = vmatprep.subr.bf16.mxu0 0
    %164 = vmatpush1.bf16.msra.mxu0 0
    %165 = vmatprep.subr.bf16.mxu0 0
    %166 = vmatpush1.bf16.msra.mxu0 0
    %167 = vmatprep.subr.bf16.mxu0 0
    %168 = vmatpush1.bf16.msra.mxu0 0
    %169 = vmatprep.mubr.bf16.mxu0 0
    %170 = vmatmul.mubr.bf16.gmra.mrb[0].mxu0 %v85
    %v171 = vpop.f32.mrb[0].mxu0
    %v172 = vadd.f32 %v75, %v171
    %v173 = vpop.f32.mrb[0].mxu0
    %v174 = vpop.f32.mrb[0].mxu0
    %v175 = vadd.f32 %v75, %v174
    %v176 = vpop.f32.mrb[0].mxu0
    %177 = vmatprep.mubr.bf16.mxu0 0
    %178 = vmatmul.mubr.bf16.gmra.mrb[0].mxu0 %v86
    %v179 = vpop.f32.mrb[0].mxu0
    %v180 = vadd.f32 %v75, %v179
    %v181 = vpop.f32.mrb[0].mxu0
    %v182 = vpop.f32.mrb[0].mxu0
    %v183 = vadd.f32 %v75, %v182
    %v184 = vpop.f32.mrb[0].mxu0
    %185 = vdwg.mxu0
    %v186 = vmax.f32 %v172, 0.0
    %v187 = vmax.f32 %v175, 0.0
    %v188 = vmax.f32 %v180, 0.0
    %v189 = vmax.f32 %v183, 0.0
    %v190 = vpack.c.bf16 %v187, %v186
    %v191 = vpack.c.bf16 %v189, %v188
    %v192 = vld [vmem:[#allocation6] sm:$0xf]
    %v193 = vld [vmem:[#allocation6 + $0x4] sm:$0xf]
    %v194 = vld [vmem:[#allocation6 + $0x8] sm:$0xf]
    %v195 = vld [vmem:[#allocation6 + $0xc] sm:$0xf]
    %v196 = vld [vmem:[#allocation6 + $0x10] sm:$0xf]
    %v197 = vld [vmem:[#allocation6 + $0x14] sm:$0xf]
    %v198 = vld [vmem:[#allocation6 + $0x18] sm:$0xf]
    %v199 = vld [vmem:[#allocation6 + $0x1c] sm:$0xf]
    %v200 = vld [vmem:[#allocation6 + $0x20] sm:$0xf]
    %v201 = vld [vmem:[#allocation6 + $0x24] sm:$0xf]
    %v202 = vld [vmem:[#allocation6 + $0x28] sm:$0xf]
    %v203 = vld [vmem:[#allocation6 + $0x2c] sm:$0xf]
    %v204 = vld [vmem:[#allocation6 + $0x30] sm:$0xf]
    %v205 = vld [vmem:[#allocation6 + $0x34] sm:$0xf]
    %v206 = vld [vmem:[#allocation6 + $0x38] sm:$0xf]
    %v207 = vld [vmem:[#allocation6 + $0x3c] sm:$0xf]
    %v208 = vld [vmem:[%s4] sm:$0x1]
    %v210 = vlaneseq
    %v211 = vshrl.u32 %v210, 7
    %v212 = vsub.s32 0, %v211
    %v213 = vrot.slane %v208, %v212
    %v231 = vunpack.c.l.b16 %v192
    %v232 = vunpack.c.l.b16 %v193
    %v233 = vunpack.c.l.b16 %v194
    %v234 = vunpack.c.l.b16 %v195
    %v235 = vunpack.c.l.b16 %v196
    %v236 = vunpack.c.l.b16 %v197
    %v237 = vunpack.c.l.b16 %v198
    %v238 = vunpack.c.l.b16 %v199
    %v239 = vunpack.c.l.b16 %v200
    %v240 = vunpack.c.l.b16 %v201
    %v241 = vunpack.c.l.b16 %v202
    %v242 = vunpack.c.l.b16 %v203
    %v243 = vunpack.c.l.b16 %v204
    %v244 = vunpack.c.l.b16 %v205
    %v245 = vunpack.c.l.b16 %v206
    %v246 = vunpack.c.l.b16 %v207
    %v247 = vpack.c.b16 %v232, %v231
    %v248 = vpack.c.b16 %v234, %v233
    %v249 = vpack.c.b16 %v236, %v235
    %v250 = vpack.c.b16 %v238, %v237
    %v251 = vpack.c.b16 %v240, %v239
    %v252 = vpack.c.b16 %v242, %v241
    %v253 = vpack.c.b16 %v244, %v243
    %v254 = vpack.c.b16 %v246, %v245
    %263 = vmatprep.subr.bf16.mxu0 0
    %264 = vmatpush1.bf16.msra.mxu0 %v247
    %265 = vmatprep.subr.bf16.mxu0 0
    %266 = vmatpush1.bf16.msra.mxu0 %v248
    %267 = vmatprep.subr.bf16.mxu0 0
    %268 = vmatpush1.bf16.msra.mxu0 %v249
    %269 = vmatprep.subr.bf16.mxu0 0
    %270 = vmatpush1.bf16.msra.mxu0 %v250
    %271 = vmatprep.subr.bf16.mxu0 0
    %272 = vmatpush1.bf16.msra.mxu0 %v251
    %273 = vmatprep.subr.bf16.mxu0 0
    %274 = vmatpush1.bf16.msra.mxu0 %v252
    %275 = vmatprep.subr.bf16.mxu0 0
    %276 = vmatpush1.bf16.msra.mxu0 %v253
    %277 = vmatprep.subr.bf16.mxu0 0
    %278 = vmatpush1.bf16.msra.mxu0 %v254
    %279 = vmatprep.subr.bf16.mxu0 0
    %280 = vmatpush1.bf16.msra.mxu0 0
    %281 = vmatprep.subr.bf16.mxu0 0
    %282 = vmatpush1.bf16.msra.mxu0 0
    %283 = vmatprep.subr.bf16.mxu0 0
    %284 = vmatpush1.bf16.msra.mxu0 0
    %285 = vmatprep.subr.bf16.mxu0 0
    %286 = vmatpush1.bf16.msra.mxu0 0
    %287 = vmatprep.subr.bf16.mxu0 0
    %288 = vmatpush1.bf16.msra.mxu0 0
    %289 = vmatprep.subr.bf16.mxu0 0
    %290 = vmatpush1.bf16.msra.mxu0 0
    %291 = vmatprep.subr.bf16.mxu0 0
    %292 = vmatpush1.bf16.msra.mxu0 0
    %293 = vmatprep.subr.bf16.mxu0 0
    %294 = vmatpush1.bf16.msra.mxu0 0
    %295 = vmatprep.mubr.bf16.mxu0 0
    %296 = vmatmul.mubr.bf16.gmra.mrb[0].mxu0 %v190
    %v297 = vpop.f32.mrb[0].mxu0
    %v298 = vadd.f32 %v213, %v297
    %v299 = vpop.f32.mrb[0].mxu0
    %v300 = vpop.f32.mrb[0].mxu0
    %v301 = vadd.f32 %v213, %v300
    %v302 = vpop.f32.mrb[0].mxu0
    %303 = vmatprep.mubr.bf16.mxu0 0
    %304 = vmatmul.mubr.bf16.gmra.mrb[0].mxu0 %v191
    %v305 = vpop.f32.mrb[0].mxu0
    %v306 = vadd.f32 %v213, %v305
    %v307 = vpop.f32.mrb[0].mxu0
    %v308 = vpop.f32.mrb[0].mxu0
    %v309 = vadd.f32 %v213, %v308
    %v310 = vpop.f32.mrb[0].mxu0
    %311 = vdwg.mxu0
    %v312 = vunpack.c.l.bf16 %v50
    %v313 = vunpack.c.l.bf16 %v51
    %v314 = vunpack.c.l.bf16 %v52
    %v315 = vunpack.c.l.bf16 %v53
    %v316 = vld [vmem:[#allocation2] sm:$0x3]
    %v317 = vmax.f32 %v298, %v301
    %v318 = vrot.slane %v317, 4
    %v319 = vmax.f32 %v317, %v318
    %v320 = vrot.slane %v319, 2
    %v321 = vmax.f32 %v319, %v320
    %v322 = vrot.slane %v321, 1
    %v323 = vmax.f32 %v321, %v322
    %v324 = vmax.f32 %v306, %v309
    %v325 = vrot.slane %v324, 4
    %v326 = vmax.f32 %v324, %v325
    %v327 = vrot.slane %v326, 2
    %v328 = vmax.f32 %v326, %v327
    %v329 = vrot.slane %v328, 1
    %v330 = vmax.f32 %v328, %v329
    %vm333 = vcmask 1041409
    %v334 = vsel %vm333, %v330, %v323
    %v336 = vmax.f32 %v316, %v334
    %v337 = vsub.f32 %v316, %v336
    %v338 = vmul.f32 %v337, 1.442695
    %v339 = vpow.pop %v338
    %v342 = vunpack.c.l.s4 1966171168
    %v343 = vunpack.c.0.s8 %v342
    %v344 = vlaneseq
    %v345 = vshrl.u32 %v344, 7
    %v346 = vsub.s32 %v343, %v345
    %v347 = vrot.slane %v336, %v346
    %v348 = vcombine.high %v347, %v347
    %v350 = vunpack.c.l.s4 1966171168
    %v351 = vunpack.c.0.s8 %v350
    %v352 = vlaneseq
    %v353 = vshrl.u32 %v352, 7
    %v354 = vsub.s32 %v351, %v353
    %v355 = vrot.slane %v347, %v354
    %v357 = vunpack.c.l.s4 1966171168
    %v358 = vunpack.c.0.s8 %v357
    %v359 = vlaneseq
    %v360 = vshrl.u32 %v359, 7
    %v361 = vsub.s32 %v358, %v360
    %v362 = vrot.slane %v348, %v361
    %v363 = vlaneseq
    %v364 = vshrl.u32 %v363, 7
    %v365 = vsub.s32 0, %v364
    %v366 = vrot.slane %v355, %v365
    %v367 = vlaneseq
    %v368 = vshrl.u32 %v367, 7
    %v369 = vsub.s32 0, %v368
    %v370 = vrot.slane %v362, %v369
    %v373 = vsub.f32 %v298, %v366
    %v374 = vsub.f32 %v301, %v366
    %v375 = vsub.f32 %v306, %v370
    %v376 = vsub.f32 %v309, %v370
    %v377 = vmul.f32 %v373, 1.442695
    %v378 = vpow.pop %v377
    %v379 = vmul.f32 %v374, 1.442695
    %v380 = vpow.pop %v379
    %v381 = vmul.f32 %v375, 1.442695
    %v382 = vpow.pop %v381
    %v383 = vmul.f32 %v376, 1.442695
    %v384 = vpow.pop %v383
    %v385 = vmul.f32 %v378, %v312
    %v386 = vmul.f32 %v380, %v313
    %v387 = vmul.f32 %v382, %v314
    %v388 = vmul.f32 %v384, %v315
    %v389 = vld [vmem:[#allocation3] sm:$0x3]
    %v390 = vmul.f32 %v339, %v389
    %v391 = vadd.f32 %v378, %v380
    %v392 = vrot.slane %v391, 4
    %v393 = vadd.f32 %v391, %v392
    %v394 = vrot.slane %v393, 2
    %v395 = vadd.f32 %v393, %v394
    %v396 = vrot.slane %v395, 1
    %v397 = vadd.f32 %v395, %v396
    %v398 = vadd.f32 %v382, %v384
    %v399 = vrot.slane %v398, 4
    %v400 = vadd.f32 %v398, %v399
    %v401 = vrot.slane %v400, 2
    %v402 = vadd.f32 %v400, %v401
    %v403 = vrot.slane %v402, 1
    %v404 = vadd.f32 %v402, %v403
    %v407 = vsel %vm333, %v404, %v397
    %v409 = vadd.f32 %v390, %v407
    %410 = vst [vmem:[#allocation3] sm:$0x3] %v409
    %v411 = vld [vmem:[#allocation4] sm:$0x3]
    %v412 = vmul.f32 %v339, %v411
    %v413 = vadd.f32 %v385, %v386
    %v414 = vrot.slane %v413, 4
    %v415 = vadd.f32 %v413, %v414
    %v416 = vrot.slane %v415, 2
    %v417 = vadd.f32 %v415, %v416
    %v418 = vrot.slane %v417, 1
    %v419 = vadd.f32 %v417, %v418
    %v420 = vadd.f32 %v387, %v388
    %v421 = vrot.slane %v420, 4
    %v422 = vadd.f32 %v420, %v421
    %v423 = vrot.slane %v422, 2
    %v424 = vadd.f32 %v422, %v423
    %v425 = vrot.slane %v424, 1
    %v426 = vadd.f32 %v424, %v425
    %v429 = vsel %vm333, %v426, %v419
    %v431 = vadd.f32 %v412, %v429
    %432 = vst [vmem:[#allocation4] sm:$0x3] %v431
    %v433 = vld [vmem:[#allocation5] sm:$0x3]
    %v434 = vmul.f32 %v339, %v433
    %v435 = vmul.f32 %v385, %v312
    %v436 = vmul.f32 %v386, %v313
    %v437 = vmul.f32 %v387, %v314
    %v438 = vmul.f32 %v388, %v315
    %v439 = vadd.f32 %v435, %v436
    %v440 = vrot.slane %v439, 4
    %v441 = vadd.f32 %v439, %v440
    %v442 = vrot.slane %v441, 2
    %v443 = vadd.f32 %v441, %v442
    %v444 = vrot.slane %v443, 1
    %v445 = vadd.f32 %v443, %v444
    %v446 = vadd.f32 %v437, %v438
    %v447 = vrot.slane %v446, 4
    %v448 = vadd.f32 %v446, %v447
    %v449 = vrot.slane %v448, 2
    %v450 = vadd.f32 %v448, %v449
    %v451 = vrot.slane %v450, 1
    %v452 = vadd.f32 %v450, %v451
    %v455 = vsel %vm333, %v452, %v445
    %v457 = vadd.f32 %v434, %v455
    %458 = vst [vmem:[#allocation5] sm:$0x3] %v457
    %459 = vst [vmem:[#allocation2] sm:$0x3] %v336
    // Predicated region
    $region38: #{ecapa_asp_forward.1} parent=1 // pred_check
      %p460 = pneg %p42
    $region39: #{ecapa_asp_forward.1} parent=1 // pred_check_branch
      %462 = sbr.rel (%p460) target = $region41
    $region40: #{ecapa_asp_forward.1} parent=1 // pred_region
      %v463 = vld [vmem:[#allocation3] sm:$0x3]
      %v464 = vrcp.pop %v463
      %v465 = vld [vmem:[#allocation4] sm:$0x3]
      %v466 = vmul.f32 %v465, %v464
      %v467 = vld [vmem:[#allocation5] sm:$0x3]
      %v468 = vmul.f32 %v467, %v464
      %v469 = vmul.f32 %v466, %v466
      %v470 = vsub.f32 %v468, %v469
      %v471 = vmax.f32 %v470, 1e-08
      %v472 = vrsqrt.pop %v471
      %v473 = vmul.f32 %v471, %v472
      %vm474 = vcmp.eq.f32.partialorder %v471, inf
      %v475 = vsel %vm474, %v471, %v473
      %vm476 = vcmp.eq.f32.partialorder %v471, 0.0
      %v477 = vand.u32 %v471, 2147483648
      %v478 = vsel %vm476, %v477, %v475
      %v479 = vpack.c.bf16 %v466, %v466
      %v480 = vpack.c.bf16 %v478, %v478
      %v481 = vld [vmem:[%s5] sm:$0xff]
      %v482 = vld [vmem:[%s5 + $0x8] sm:$0xff]
      %v483 = vld [vmem:[%s5 + $0x10] sm:$0xff]
      %v484 = vld [vmem:[%s5 + $0x18] sm:$0xff]
      %v485 = vld [vmem:[%s5 + $0x20] sm:$0xff]
      %v486 = vld [vmem:[%s5 + $0x28] sm:$0xff]
      %v487 = vld [vmem:[%s5 + $0x30] sm:$0xff]
      %v488 = vld [vmem:[%s5 + $0x38] sm:$0xff]
      %v489 = vld [vmem:[%s5 + $0x40] sm:$0xff]
      %v490 = vld [vmem:[%s5 + $0x48] sm:$0xff]
      %v491 = vld [vmem:[%s5 + $0x50] sm:$0xff]
      %v492 = vld [vmem:[%s5 + $0x58] sm:$0xff]
      %v493 = vld [vmem:[%s5 + $0x60] sm:$0xff]
      %v494 = vld [vmem:[%s5 + $0x68] sm:$0xff]
      %v495 = vld [vmem:[%s5 + $0x70] sm:$0xff]
      %v496 = vld [vmem:[%s5 + $0x78] sm:$0xff]
      %v497 = vld [vmem:[%s5 + $0x80] sm:$0xff]
      %v498 = vld [vmem:[%s5 + $0x88] sm:$0xff]
      %v499 = vld [vmem:[%s5 + $0x90] sm:$0xff]
      %v500 = vld [vmem:[%s5 + $0x98] sm:$0xff]
      %v501 = vld [vmem:[%s5 + $0xa0] sm:$0xff]
      %v502 = vld [vmem:[%s5 + $0xa8] sm:$0xff]
      %v503 = vld [vmem:[%s5 + $0xb0] sm:$0xff]
      %v504 = vld [vmem:[%s5 + $0xb8] sm:$0xff]
      %v505 = vld [vmem:[%s5 + $0xc0] sm:$0xff]
      %v506 = vld [vmem:[%s5 + $0xc8] sm:$0xff]
      %v507 = vld [vmem:[%s5 + $0xd0] sm:$0xff]
      %v508 = vld [vmem:[%s5 + $0xd8] sm:$0xff]
      %v509 = vld [vmem:[%s5 + $0xe0] sm:$0xff]
      %v510 = vld [vmem:[%s5 + $0xe8] sm:$0xff]
      %v511 = vld [vmem:[%s5 + $0xf0] sm:$0xff]
      %v512 = vld [vmem:[%s5 + $0xf8] sm:$0xff]
      %v513 = vld [vmem:[%s6] sm:$0x3]
      %v515 = vlaneseq
      %v516 = vshrl.u32 %v515, 7
      %v517 = vsub.s32 0, %v516
      %v518 = vrot.slane %v513, %v517
      %v519 = vlaneseq
      %v520 = vshrl.u32 %v519, 7
      %v521 = vsub.s32 1, %v520
      %v522 = vrot.slane %v513, %v521
      %v557 = vunpack.c.l.b16 %v481
      %v558 = vunpack.c.h.b16 %v481
      %v559 = vunpack.c.l.b16 %v482
      %v560 = vunpack.c.h.b16 %v482
      %v561 = vunpack.c.l.b16 %v483
      %v562 = vunpack.c.h.b16 %v483
      %v563 = vunpack.c.l.b16 %v484
      %v564 = vunpack.c.h.b16 %v484
      %v565 = vunpack.c.l.b16 %v485
      %v566 = vunpack.c.h.b16 %v485
      %v567 = vunpack.c.l.b16 %v486
      %v568 = vunpack.c.h.b16 %v486
      %v569 = vunpack.c.l.b16 %v487
      %v570 = vunpack.c.h.b16 %v487
      %v571 = vunpack.c.l.b16 %v488
      %v572 = vunpack.c.h.b16 %v488
      %v573 = vunpack.c.l.b16 %v489
      %v574 = vunpack.c.h.b16 %v489
      %v575 = vunpack.c.l.b16 %v490
      %v576 = vunpack.c.h.b16 %v490
      %v577 = vunpack.c.l.b16 %v491
      %v578 = vunpack.c.h.b16 %v491
      %v579 = vunpack.c.l.b16 %v492
      %v580 = vunpack.c.h.b16 %v492
      %v581 = vunpack.c.l.b16 %v493
      %v582 = vunpack.c.h.b16 %v493
      %v583 = vunpack.c.l.b16 %v494
      %v584 = vunpack.c.h.b16 %v494
      %v585 = vunpack.c.l.b16 %v495
      %v586 = vunpack.c.h.b16 %v495
      %v587 = vunpack.c.l.b16 %v496
      %v588 = vunpack.c.h.b16 %v496
      %v589 = vunpack.c.l.b16 %v497
      %v590 = vunpack.c.h.b16 %v497
      %v591 = vunpack.c.l.b16 %v498
      %v592 = vunpack.c.h.b16 %v498
      %v593 = vunpack.c.l.b16 %v499
      %v594 = vunpack.c.h.b16 %v499
      %v595 = vunpack.c.l.b16 %v500
      %v596 = vunpack.c.h.b16 %v500
      %v597 = vunpack.c.l.b16 %v501
      %v598 = vunpack.c.h.b16 %v501
      %v599 = vunpack.c.l.b16 %v502
      %v600 = vunpack.c.h.b16 %v502
      %v601 = vunpack.c.l.b16 %v503
      %v602 = vunpack.c.h.b16 %v503
      %v603 = vunpack.c.l.b16 %v504
      %v604 = vunpack.c.h.b16 %v504
      %v605 = vunpack.c.l.b16 %v505
      %v606 = vunpack.c.h.b16 %v505
      %v607 = vunpack.c.l.b16 %v506
      %v608 = vunpack.c.h.b16 %v506
      %v609 = vunpack.c.l.b16 %v507
      %v610 = vunpack.c.h.b16 %v507
      %v611 = vunpack.c.l.b16 %v508
      %v612 = vunpack.c.h.b16 %v508
      %v613 = vunpack.c.l.b16 %v509
      %v614 = vunpack.c.h.b16 %v509
      %v615 = vunpack.c.l.b16 %v510
      %v616 = vunpack.c.h.b16 %v510
      %v617 = vunpack.c.l.b16 %v511
      %v618 = vunpack.c.h.b16 %v511
      %v619 = vunpack.c.l.b16 %v512
      %v620 = vunpack.c.h.b16 %v512
      %v621 = vpack.c.b16 %v559, %v557
      %v622 = vpack.c.b16 %v560, %v558
      %v623 = vpack.c.b16 %v563, %v561
      %v624 = vpack.c.b16 %v564, %v562
      %v625 = vpack.c.b16 %v567, %v565
      %v626 = vpack.c.b16 %v568, %v566
      %v627 = vpack.c.b16 %v571, %v569
      %v628 = vpack.c.b16 %v572, %v570
      %v629 = vpack.c.b16 %v575, %v573
      %v630 = vpack.c.b16 %v576, %v574
      %v631 = vpack.c.b16 %v579, %v577
      %v632 = vpack.c.b16 %v580, %v578
      %v633 = vpack.c.b16 %v583, %v581
      %v634 = vpack.c.b16 %v584, %v582
      %v635 = vpack.c.b16 %v587, %v585
      %v636 = vpack.c.b16 %v588, %v586
      %v637 = vpack.c.b16 %v591, %v589
      %v638 = vpack.c.b16 %v592, %v590
      %v639 = vpack.c.b16 %v595, %v593
      %v640 = vpack.c.b16 %v596, %v594
      %v641 = vpack.c.b16 %v599, %v597
      %v642 = vpack.c.b16 %v600, %v598
      %v643 = vpack.c.b16 %v603, %v601
      %v644 = vpack.c.b16 %v604, %v602
      %v645 = vpack.c.b16 %v607, %v605
      %v646 = vpack.c.b16 %v608, %v606
      %v647 = vpack.c.b16 %v611, %v609
      %v648 = vpack.c.b16 %v612, %v610
      %v649 = vpack.c.b16 %v615, %v613
      %v650 = vpack.c.b16 %v616, %v614
      %v651 = vpack.c.b16 %v619, %v617
      %v652 = vpack.c.b16 %v620, %v618
      %685 = vmatprep.subr.bf16.mxu0 %v622
      %686 = vmatpush1.bf16.msra.mxu0 %v621
      %687 = vmatprep.subr.bf16.mxu0 %v624
      %688 = vmatpush1.bf16.msra.mxu0 %v623
      %689 = vmatprep.subr.bf16.mxu0 %v626
      %690 = vmatpush1.bf16.msra.mxu0 %v625
      %691 = vmatprep.subr.bf16.mxu0 %v628
      %692 = vmatpush1.bf16.msra.mxu0 %v627
      %693 = vmatprep.subr.bf16.mxu0 %v630
      %694 = vmatpush1.bf16.msra.mxu0 %v629
      %695 = vmatprep.subr.bf16.mxu0 %v632
      %696 = vmatpush1.bf16.msra.mxu0 %v631
      %697 = vmatprep.subr.bf16.mxu0 %v634
      %698 = vmatpush1.bf16.msra.mxu0 %v633
      %699 = vmatprep.subr.bf16.mxu0 %v636
      %700 = vmatpush1.bf16.msra.mxu0 %v635
      %701 = vmatprep.subr.bf16.mxu0 %v638
      %702 = vmatpush1.bf16.msra.mxu0 %v637
      %703 = vmatprep.subr.bf16.mxu0 %v640
      %704 = vmatpush1.bf16.msra.mxu0 %v639
      %705 = vmatprep.subr.bf16.mxu0 %v642
      %706 = vmatpush1.bf16.msra.mxu0 %v641
      %707 = vmatprep.subr.bf16.mxu0 %v644
      %708 = vmatpush1.bf16.msra.mxu0 %v643
      %709 = vmatprep.subr.bf16.mxu0 %v646
      %710 = vmatpush1.bf16.msra.mxu0 %v645
      %711 = vmatprep.subr.bf16.mxu0 %v648
      %712 = vmatpush1.bf16.msra.mxu0 %v647
      %713 = vmatprep.subr.bf16.mxu0 %v650
      %714 = vmatpush1.bf16.msra.mxu0 %v649
      %715 = vmatprep.subr.bf16.mxu0 %v652
      %716 = vmatpush1.bf16.msra.mxu0 %v651
      %717 = vmatprep.mubr.bf16.mxu0 %v480
      %718 = vmatmul.mubr.bf16.gmra.mrb[0].mxu0 %v479
      %v719 = vpop.f32.mrb[0].mxu0
      %v720 = vadd.f32 %v518, %v719
      %v721 = vpop.f32.mrb[0].mxu0
      %v722 = vadd.f32 %v522, %v721
      %v723 = vpop.f32.mrb[0].mxu0
      %v724 = vpop.f32.mrb[0].mxu0
      %725 = vdwg.mxu0
      %v728 = vcombine.low %v720, %v722
      %v730 = vunpack.c.l.s4 1983009808
      %v731 = vunpack.c.0.s8 %v730
      %v732 = vlaneseq
      %v733 = vshrl.u32 %v732, 7
      %v734 = vsub.s32 %v731, %v733
      %v735 = vrot.slane %v728, %v734
      %737 = vst [vmem:[#allocation9] sm:$0xf] %v735
    $region41: #{ecapa_asp_forward.1} parent=1 // pred_fallthru
      _
    // Predicated region
    $region42: #{ecapa_asp_forward.1} parent=1 // pred_check
      _
    $region43: #{ecapa_asp_forward.1} parent=1 // pred_check_branch
      %739 = sbr.rel (0) target = $region45
    $region44: #{ecapa_asp_forward.1} parent=1 // pred_region
      %s741 = ssub.s32 64, 64
      %742 = vsyncadd [#allocation8], %s741
      %s744 = sshll.u32 [#allocation9], 4
      %s745 = int_to_ptr.vmem [resolvable:$true] %s744
      %747 = dma.vmem_to_hbm [thread:$0]  %s745, 64, %s7, [#allocation8]
    $region45: #{ecapa_asp_forward.1} parent=1 // pred_fallthru
      _
    // Predicated region
    $region46: #{ecapa_asp_forward.1} parent=1 // pred_check
      _
    $region47: #{ecapa_asp_forward.1} parent=1 // pred_check_branch
      %749 = sbr.rel (0) target = $region49
    $region48: #{ecapa_asp_forward.1} parent=1 // pred_region
      %750 = dma.done [#allocation8], 64
    $region49: #{ecapa_asp_forward.1} parent=1 // pred_fallthru
      _
    %751 = vsyncpa [#allocation7], 1
    %752 = vsyncpa [#allocation8], 1

</llo_original>
